<compile_context>
chip_gen: v7x
topology: tpu7x:2x2x1
jax: 0.10.0
libtpu: 0.0.40
codegen_flags: <defaults>
</compile_context>

<pallas_src>
import functools

import jax
import jax.numpy as jnp
from jax.experimental import pallas as pl
from jax.experimental.pallas import tpu as pltpu


def _cluster_sum_kernel(cid_ref, x_ref, out_ref, iota_ref):
    """One (feature-block, node-tile) step: accumulate per-cluster feature sums."""
    ni = pl.program_id(1)                       # node-tile axis (reduction, innermost)

    @pl.when(ni == 0)
    def _():
        out_ref[...] = jnp.zeros_like(out_ref)
        # Hoisted: the cluster-row iota is generated once per feature block, not per
        # node tile.
        iota_ref[...] = jax.lax.broadcasted_iota(jnp.int32, iota_ref.shape, 0)

    ids = cid_ref[0, :]                         # (tile_n,) int32, -1 for padded nodes
    # One-hot scatter matrix (c_pad, tile_n) in x's dtype: 0/1 are exact in bf16, so
    # bf16 inputs hit the bf16 MXU path; accumulation stays f32.
    one_hot = (iota_ref[...] == ids[None, :]).astype(x_ref.dtype)
    out_ref[...] += jnp.dot(one_hot, x_ref[...],
                            preferred_element_type=jnp.float32)


@functools.partial(jax.jit, static_argnames=("num_clusters", "tile_n", "tile_f"))
def cluster_mean_pool(x, cluster_assignment, *, num_clusters, tile_n=512, tile_f=512):
    """Pallas equivalent of ClusterPoolingLayer(pool_type='mean').forward(X, cluster)."""
    n, f = x.shape

    # Feature axis: lane-dense (multiple of 128), tiled by tile_f (parallel grid axis).
    f_pad128 = pl.cdiv(f, 128) * 128
    tile_f = max(128, min((tile_f // 128) * 128, f_pad128))
    f_pad = pl.cdiv(f, tile_f) * tile_f

    # Node axis: tile must be a multiple of 128 (MXU K dim / cid lane dim); clamp to N
    # so tiny inputs don't over-pad.
    tile_n = max(128, (tile_n // 128) * 128)
    tile_n = min(tile_n, pl.cdiv(n, 128) * 128)
    n_pad = pl.cdiv(n, tile_n) * tile_n

    # Cluster axis padded to the sublane granule (avoids a degenerate MXU M dim too).
    c_pad = pl.cdiv(max(num_clusters, 1), 8) * 8

    cid = cluster_assignment.astype(jnp.int32)
    # Per-cluster member counts: depend only on cluster_assignment -> cheap XLA op.
    counts = jnp.zeros((num_clusters,), jnp.float32).at[cid].add(1.0)

    x_p = x
    if (n_pad, f_pad) != (n, f):
        x_p = jnp.pad(x, ((0, n_pad - n), (0, f_pad - f)))
    cid_p = cid
    if n_pad != n:
        cid_p = jnp.pad(cid, (0, n_pad - n), constant_values=-1)  # matches no cluster
    cid2d = cid_p.reshape(1, n_pad)

    grid = (f_pad // tile_f, n_pad // tile_n)   # (parallel feature blocks, node reduction)

    sums = pl.pallas_call(
        _cluster_sum_kernel,
        out_shape=jax.ShapeDtypeStruct((c_pad, f_pad), jnp.float32),
        grid_spec=pltpu.PrefetchScalarGridSpec(
            num_scalar_prefetch=0,
            grid=grid,
            in_specs=[
                pl.BlockSpec((1, tile_n), lambda fj, ni: (0, ni)),        # cluster ids
                pl.BlockSpec((tile_n, tile_f), lambda fj, ni: (ni, fj)),  # X tile
            ],
            out_specs=pl.BlockSpec((c_pad, tile_f), lambda fj, ni: (0, fj)),
            scratch_shapes=[
                pltpu.VMEM((c_pad, tile_n), jnp.int32),  # hoisted cluster-row iota
            ],
        ),
        compiler_params=pltpu.CompilerParams(
            dimension_semantics=("parallel", "arbitrary")),
    )(cid2d, x_p)

    pooled = sums[:num_clusters, :f] / jnp.maximum(counts, 1.0)[:, None]
    return pooled.astype(x.dtype)


if __name__ == "__main__":
    key = jax.random.PRNGKey(0)
    kx, kc = jax.random.split(key)

    N, F, C = 16, 32, 4
    X = jax.random.normal(kx, (N, F), dtype=jnp.float32)
    cluster_assignment = jax.random.randint(kc, (N,), 0, C, dtype=jnp.int32)

    pooled = cluster_mean_pool(X, cluster_assignment, num_clusters=C)
    pooled = jax.block_until_ready(pooled)

    # Reference check (plain JAX segment mean, same semantics as global_mean_pool).
    seg_sum = jax.ops.segment_sum(X, cluster_assignment, num_segments=C)
    seg_cnt = jax.ops.segment_sum(jnp.ones((N, 1), jnp.float32),
                                  cluster_assignment, num_segments=C)
    ref = seg_sum / jnp.maximum(seg_cnt, 1.0)
    assert pooled.shape == (C, F)
    assert jnp.allclose(pooled, ref, atol=1e-5, rtol=1e-5)

    print("KERNEL_OK")
</pallas_src>

<mosaic_0001>
module attributes {stable_mosaic.version = 11 : i64} {
  func.func private @main(%arg0: i32) attributes {dimension_semantics = [#tpu.dimension_semantics<core_parallel>], iteration_bounds = array<i64: 2>, tpu.core_type = #tpu.core_type<sc_scalar_subcore>, window_params = []} {
    return
  }
}

module attributes {stable_mosaic.version = 11 : i64} {
  func.func private @main(%arg0: i32) attributes {dimension_semantics = [#tpu.dimension_semantics<core_parallel>], iteration_bounds = array<i64: 2>, tpu.core_type = #tpu.core_type<sc_scalar_subcore>, window_params = []} {
    return
  }
}

module attributes {stable_mosaic.version = 11 : i64} {
  func.func @_cluster_sum_kernel(%arg0: i32, %arg1: i32, %arg2: memref<1x128xi32, #tpu.memory_space<vmem>>, %arg3: memref<128x128xf32, #tpu.memory_space<vmem>>, %arg4: memref<8x128xf32, #tpu.memory_space<vmem>>, %arg5: memref<8x128xi32, #tpu.memory_space<vmem>>) attributes {dimension_semantics = [#tpu.dimension_semantics<parallel>, #tpu.dimension_semantics<arbitrary>], iteration_bounds = array<i64: 1, 1>, scalar_prefetch = 0 : i64, scratch_operands = 1 : i64, tpu.core_type = #tpu.core_type<tc>, window_params = [{transform_indices = @transform_0, window_bounds = array<i64: 1, 128>}, {transform_indices = @transform_1, window_bounds = array<i64: 128, 128>}, {transform_indices = @transform_2, window_bounds = array<i64: 8, 128>}]} {
    %c0_i32 = arith.constant 0 : i32
    %0 = arith.cmpi eq, %arg1, %c0_i32 : i32
    %1 = arith.extui %0 : i1 to i32
    %c0_i32_0 = arith.constant 0 : i32
    %2 = arith.cmpi ne, %1, %c0_i32_0 : i32
    scf.if %2 {
      %cst_10 = arith.constant 0.000000e+00 : f32
      %16 = vector.broadcast %cst_10 : f32 to vector<8x128xf32>
      %c0_11 = arith.constant 0 : index
      %c0_12 = arith.constant 0 : index
      %17 = vector.load %arg4[%c0_11, %c0_12] : memref<8x128xf32, #tpu.memory_space<vmem>>, vector<8x128xf32>
      tpu.vector_store %arg4[%c0_11, %c0_12], %16 {strides = array<i32>} : memref<8x128xf32, #tpu.memory_space<vmem>>, vector<8x128xf32>,
      %18 = tpu.iota {dimensions = array<i32: 0>} : vector<8x128xi32>
      %c0_13 = arith.constant 0 : index
      %c0_14 = arith.constant 0 : index
      %19 = vector.load %arg5[%c0_13, %c0_14] : memref<8x128xi32, #tpu.memory_space<vmem>>, vector<8x128xi32>
      tpu.vector_store %arg5[%c0_13, %c0_14], %18 {strides = array<i32>} : memref<8x128xi32, #tpu.memory_space<vmem>>, vector<8x128xi32>,
    } else {
    }
    %c0 = arith.constant 0 : index
    %c0_1 = arith.constant 0 : index
    %3 = vector.load %arg2[%c0, %c0_1] : memref<1x128xi32, #tpu.memory_space<vmem>>, vector<1x128xi32>
    %4 = vector.shape_cast %3 : vector<1x128xi32> to vector<128xi32>
    %c0_2 = arith.constant 0 : index
    %c0_3 = arith.constant 0 : index
    %5 = vector.load %arg5[%c0_2, %c0_3] : memref<8x128xi32, #tpu.memory_space<vmem>>, vector<8x128xi32>
    %6 = vector.shape_cast %4 : vector<128xi32> to vector<1x128xi32>
    %7 = vector.broadcast %6 : vector<1x128xi32> to vector<8x128xi32>
    %8 = arith.cmpi eq, %5, %7 : vector<8x128xi32>
    %9 = arith.extui %8 : vector<8x128xi1> to vector<8x128xi32>
    %10 = arith.sitofp %9 : vector<8x128xi32> to vector<8x128xf32>
    %c0_4 = arith.constant 0 : index
    %c0_5 = arith.constant 0 : index
    %11 = vector.load %arg4[%c0_4, %c0_5] : memref<8x128xf32, #tpu.memory_space<vmem>>, vector<8x128xf32>
    %c0_6 = arith.constant 0 : index
    %c0_7 = arith.constant 0 : index
    %12 = vector.load %arg3[%c0_6, %c0_7] : memref<128x128xf32, #tpu.memory_space<vmem>>, vector<128x128xf32>
    %cst = arith.constant dense<0.000000e+00> : vector<8x128xf32>
    %13 = tpu.matmul %10, %12, %cst {dimension_numbers = #tpu.dot_dimension_numbers<[1], [0], [0], [1], [0, 0, 1, 1], [], []>} : vector<8x128xf32>, vector<128x128xf32>, vector<8x128xf32> -> vector<8x128xf32>
    %14 = arith.addf %11, %13 : vector<8x128xf32>
    %c0_8 = arith.constant 0 : index
    %c0_9 = arith.constant 0 : index
    %15 = vector.load %arg4[%c0_8, %c0_9] : memref<8x128xf32, #tpu.memory_space<vmem>>, vector<8x128xf32>
    tpu.vector_store %arg4[%c0_8, %c0_9], %14 {strides = array<i32>} : memref<8x128xf32, #tpu.memory_space<vmem>>, vector<8x128xf32>,
    return
  }
  func.func @transform_0(%arg0: i32, %arg1: i32) -> (i32, i32) {
    %c0_i32 = arith.constant 0 : i32
    %c0_i32_0 = arith.constant 0 : i32
    return %c0_i32, %arg1 : i32, i32
  }
  func.func @transform_1(%arg0: i32, %arg1: i32) -> (i32, i32) {
    %c0_i32 = arith.constant 0 : i32
    return %arg1, %arg0 : i32, i32
  }
  func.func @transform_2(%arg0: i32, %arg1: i32) -> (i32, i32) {
    %c0_i32 = arith.constant 0 : i32
    %c0_i32_0 = arith.constant 0 : i32
    return %c0_i32, %arg0 : i32, i32
  }
}

</mosaic_0001>

<llo_original>
// kernel: cluster_mean_pool.1
$region0: #{cluster_mean_pool.1}
  #allocation0 [shape = 'u32[]', space=smem, size = 0x4, offset = 0x4, fixed_abs, tag = 'smem constant byte address 0x4 - core index']
  #allocation1 [shape = 'u32[144,128]{1,0:T(1,128)}', space=vmem, size = 0x12000, scoped, tag = 'internal scratch']
  #allocation2 [shape = 's32[8,128]{1,0:T(8,128)}', space=vmem, size = 0x1000, scoped, tag = 'scratch operand']
  %s0 = inlined_call_operand.vmem [shape: s32[1,128], index: 0, kind: input, shape index: {}]
  %s1 = inlined_call_operand.vmem [shape: f32[128,128], index: 1, kind: input, shape index: {}]
  %s2 = inlined_call_operand.vmem [shape: f32[8,128], index: 2, kind: output, shape index: {}]
  %s3 = sld [smem:[#allocation0]]
  $region22: #{cluster_mean_pool.1} parent=0
    _
  %s5 = ssub.s32 1, %s3
  %s6 = scalar_select 0, %s5, %s3
  // Predicated region
  $region2: #{cluster_mean_pool.1} parent=0 // pred_check
    _
  $region3: #{cluster_mean_pool.1} parent=0 // pred_check_branch
    %8 = sbr.rel (0) target = $region5
  $region4: #{cluster_mean_pool.1} parent=0 // pred_region
    _
  $region5: #{cluster_mean_pool.1} parent=0 // pred_fallthru
    _
  // Predicated region
  $region6: #{cluster_mean_pool.1} parent=0 // pred_check
    _
  $region7: #{cluster_mean_pool.1} parent=0 // pred_check_branch
    %10 = sbr.rel (0) target = $region9
  $region8: #{cluster_mean_pool.1} parent=0 // pred_region
    _
  $region9: #{cluster_mean_pool.1} parent=0 // pred_fallthru
    _
  %p11 = scmp.eq.s32.totalorder 0, 0
  // Predicated region
  $region10: #{cluster_mean_pool.1} parent=0 // pred_check
    %p12 = pneg %p11
  $region11: #{cluster_mean_pool.1} parent=0 // pred_check_branch
    %14 = sbr.rel (%p12) target = $region13
  $region12: #{cluster_mean_pool.1} parent=0 // pred_region
    %15 = vst [vmem:[%s2] sm:$0xff] 0.0
    %v16 = vlaneseq
    %v17 = vshrl.u32 %v16, 7
    %18 = vst [vmem:[#allocation2] sm:$0xff] %v17
  $region13: #{cluster_mean_pool.1} parent=0 // pred_fallthru
    _
  %v19 = vld [vmem:[%s0] sm:$0x1]
  %v20 = vld [vmem:[#allocation2] sm:$0xff]
  %v21 = vlaneseq
  %v22 = vshrl.u32 %v21, 7
  %v23 = vsub.s32 0, %v22
  %v24 = vrot.slane %v19, %v23
  %vm25 = vcmp.eq.s32.totalorder %v20, %v24
  %v26 = vsel %vm25, 1, 0
  %v27 = vcvt.s32.f32 %v26
  %v28 = vld [vmem:[%s2] sm:$0xff]
  %v29 = vld [vmem:[%s1] sm:$0xff]
  %v30 = vld [vmem:[%s1 + $0x8] sm:$0xff]
  %v31 = vld [vmem:[%s1 + $0x10] sm:$0xff]
  %v32 = vld [vmem:[%s1 + $0x18] sm:$0xff]
  %v33 = vld [vmem:[%s1 + $0x20] sm:$0xff]
  %v34 = vld [vmem:[%s1 + $0x28] sm:$0xff]
  %v35 = vld [vmem:[%s1 + $0x30] sm:$0xff]
  %v36 = vld [vmem:[%s1 + $0x38] sm:$0xff]
  %v37 = vld [vmem:[%s1 + $0x40] sm:$0xff]
  %v38 = vld [vmem:[%s1 + $0x48] sm:$0xff]
  %v39 = vld [vmem:[%s1 + $0x50] sm:$0xff]
  %v40 = vld [vmem:[%s1 + $0x58] sm:$0xff]
  %v41 = vld [vmem:[%s1 + $0x60] sm:$0xff]
  %v42 = vld [vmem:[%s1 + $0x68] sm:$0xff]
  %v43 = vld [vmem:[%s1 + $0x70] sm:$0xff]
  %v44 = vld [vmem:[%s1 + $0x78] sm:$0xff]
  %45 = vmatprep.subr.mxu0 0.0
  %46 = vmatpush1.msra.mxu0 %v29
  %47 = vmatprep.subr.mxu0 0.0
  %48 = vmatpush1.msra.mxu0 %v30
  %49 = vmatprep.subr.mxu0 0.0
  %50 = vmatpush1.msra.mxu0 %v31
  %51 = vmatprep.subr.mxu0 0.0
  %52 = vmatpush1.msra.mxu0 %v32
  %53 = vmatprep.subr.mxu0 0.0
  %54 = vmatpush1.msra.mxu0 %v33
  %55 = vmatprep.subr.mxu0 0.0
  %56 = vmatpush1.msra.mxu0 %v34
  %57 = vmatprep.subr.mxu0 0.0
  %58 = vmatpush1.msra.mxu0 %v35
  %59 = vmatprep.subr.mxu0 0.0
  %60 = vmatpush1.msra.mxu0 %v36
  %61 = vmatprep.subr.mxu0 0.0
  %62 = vmatpush1.msra.mxu0 %v37
  %63 = vmatprep.subr.mxu0 0.0
  %64 = vmatpush1.msra.mxu0 %v38
  %65 = vmatprep.subr.mxu0 0.0
  %66 = vmatpush1.msra.mxu0 %v39
  %67 = vmatprep.subr.mxu0 0.0
  %68 = vmatpush1.msra.mxu0 %v40
  %69 = vmatprep.subr.mxu0 0.0
  %70 = vmatpush1.msra.mxu0 %v41
  %71 = vmatprep.subr.mxu0 0.0
  %72 = vmatpush1.msra.mxu0 %v42
  %73 = vmatprep.subr.mxu0 0.0
  %74 = vmatpush1.msra.mxu0 %v43
  %75 = vmatprep.subr.mxu0 0.0
  %76 = vmatpush1.msra.mxu0 %v44
  %77 = vmatprep.subr.mxu0 0.0
  %78 = vmatpush1.msra.mxu0 0.0
  %79 = vmatprep.subr.mxu0 0.0
  %80 = vmatpush1.msra.mxu0 0.0
  %81 = vmatprep.subr.mxu0 0.0
  %82 = vmatpush1.msra.mxu0 0.0
  %83 = vmatprep.subr.mxu0 0.0
  %84 = vmatpush1.msra.mxu0 0.0
  %85 = vmatprep.subr.mxu0 0.0
  %86 = vmatpush1.msra.mxu0 0.0
  %87 = vmatprep.subr.mxu0 0.0
  %88 = vmatpush1.msra.mxu0 0.0
  %89 = vmatprep.subr.mxu0 0.0
  %90 = vmatpush1.msra.mxu0 0.0
  %91 = vmatprep.subr.mxu0 0.0
  %92 = vmatpush1.msra.mxu0 0.0
  %93 = vmatprep.subr.mxu0 0.0
  %94 = vmatpush1.msra.mxu0 0.0
  %95 = vmatprep.subr.mxu0 0.0
  %96 = vmatpush1.msra.mxu0 0.0
  %97 = vmatprep.subr.mxu0 0.0
  %98 = vmatpush1.msra.mxu0 0.0
  %99 = vmatprep.subr.mxu0 0.0
  %100 = vmatpush1.msra.mxu0 0.0
  %101 = vmatprep.subr.mxu0 0.0
  %102 = vmatpush1.msra.mxu0 0.0
  %103 = vmatprep.subr.mxu0 0.0
  %104 = vmatpush1.msra.mxu0 0.0
  %105 = vmatprep.subr.mxu0 0.0
  %106 = vmatpush1.msra.mxu0 0.0
  %107 = vmatprep.subr.mxu0 0.0
  %108 = vmatpush1.msra.mxu0 0.0
  %109 = vmatprep.mubr.f32.mxu0 0.0
  %110 = vmatmul.mubr.f32.gmra.mrb[0].mxu0 %v27
  %v111 = vpop.f32.mrb[0].mxu0
  %v112 = vadd.f32 0.0, %v111
  %v113 = vpop.f32.mrb[0].mxu0
  %114 = vdwg.mxu0
  %v115 = vadd.f32 %v28, %v112
  %116 = vst [vmem:[%s2] sm:$0xff] %v115
  // Predicated region
  $region14: #{cluster_mean_pool.1} parent=0 // pred_check
    _
  $region15: #{cluster_mean_pool.1} parent=0 // pred_check_branch
    %118 = sbr.rel (0) target = $region17
  $region16: #{cluster_mean_pool.1} parent=0 // pred_region
    _
  $region17: #{cluster_mean_pool.1} parent=0 // pred_fallthru
    _
  // Predicated region
  $region18: #{cluster_mean_pool.1} parent=0 // pred_check
    _
  $region19: #{cluster_mean_pool.1} parent=0 // pred_check_branch
    %120 = sbr.rel (0) target = $region21
  $region20: #{cluster_mean_pool.1} parent=0 // pred_region
    _
  $region21: #{cluster_mean_pool.1} parent=0 // pred_fallthru
    _

</llo_original>
